<compile_context>
chip_gen: v6e
topology: v6e:2x2x1
jax: 0.10.0
libtpu: 0.0.40
codegen_flags: <defaults>
</compile_context>

<pallas_src>
import jax
import jax.numpy as jnp
from jax.experimental import pallas as pl
from jax.experimental.pallas import tpu as pltpu


def _upsample_conv_cat_kernel(w_ref, b_ref, r_ref, x_ref, fm_ref, o_ref):
    # w_ref : (C_out, C)          resident 1x1-conv weight
    # b_ref : (C_out, 1)          resident bias
    # r_ref : (TH*W, TH*4W)       resident one-hot 2x2 replication matrix
    # x_ref : (C, TH*W)           original (un-upsampled) activation row chunk
    # fm_ref: (C_out, TH*4W)      skip feature-map chunk (already 2H x 2W res.)
    # o_ref : (C, TH*4W)          concatenated output chunk (conv | skip)
    c_out = fm_ref.shape[0]

    # 1x1 conv on the original resolution (4x fewer MACs / bytes than conv on
    # the upsampled tensor).
    y = jnp.dot(w_ref[...], x_ref[...], preferred_element_type=jnp.float32)
    y = y + b_ref[...]                                   # (C_out, TH*W)

    # Fused nearest x2 upsample: each column of r_ref has exactly one 1, so
    # this selects y[c, src(col)] for every output position, already laid out
    # in the final row-major (2H, 2W) order of this row chunk.
    z = jnp.dot(y, r_ref[...], preferred_element_type=jnp.float32)

    o_ref[:c_out, :] = z.astype(o_ref.dtype)             # conv channels
    o_ref[c_out:, :] = fm_ref[...]                       # skip channels


def _make_upsample_matrix(w, row_tile, dtype):
    """One-hot R of shape (row_tile*W, row_tile*4W):  for Y (C_out, row_tile*W)
    holding `row_tile` image rows row-major, Y @ R is the nearest-neighbour
    2x2-upsampled chunk, row-major over the (2*row_tile, 2W) output grid."""
    k = row_tile * w
    m = row_tile * 4 * w
    src = jnp.arange(k, dtype=jnp.int32)
    dst = jnp.arange(m, dtype=jnp.int32)
    src_row = src // w
    src_col = src % w
    dst_row = dst // (4 * w)           # input row feeding this output position
    dst_col = (dst % (2 * w)) // 2     # input col feeding this output position
    eq = (src_row[:, None] == dst_row[None, :]) & (src_col[:, None] == dst_col[None, :])
    return eq.astype(dtype)


def _pick_row_tile(h, w, itemsize=4, r_budget=2 * 1024 * 1024):
    """Largest divisor of H whose lane extents are 128-aligned (or full-width)
    and whose replication matrix stays within a small VMEM budget."""
    divisors = [d for d in range(h, 0, -1) if h % d == 0]
    cands = [d for d in divisors if d == h or (d * w) % 128 == 0]
    if not cands:
        cands = [h]
    for d in cands:
        if (d * w) * (d * 4 * w) * itemsize <= r_budget:
            return d
    return cands[-1]


def upsample_forward(x, feature_map, weight, bias):
    """x: (N, C, H, W), feature_map: (N, C//2, 2H, 2W),
    weight: (C//2, C) (1x1 conv kernel squeezed), bias: (C//2,)."""
    n, c, h, w = x.shape
    c_out = c // 2
    h2, w2 = 2 * h, 2 * w
    assert feature_map.shape == (n, c_out, h2, w2)
    assert weight.shape == (c_out, c)

    th = _pick_row_tile(h, w, itemsize=x.dtype.itemsize)
    s_in = th * w            # input lanes per grid step
    s_out = th * 4 * w       # output lanes per grid step (2x2 upsampled)

    # Free (contiguous) reshapes only; no data movement.
    x_flat = x.reshape(n, c, h * w)
    fm_flat = feature_map.reshape(n, c_out, h2 * w2)
    b2d = bias.reshape(c_out, 1)
    rmat = _make_upsample_matrix(w, th, x.dtype)

    out_flat = pl.pallas_call(
        _upsample_conv_cat_kernel,
        out_shape=jax.ShapeDtypeStruct((n, c, h2 * w2), x.dtype),
        grid=(n, h // th),
        in_specs=[
            pl.BlockSpec((c_out, c), lambda i, j: (0, 0)),          # weight (resident)
            pl.BlockSpec((c_out, 1), lambda i, j: (0, 0)),          # bias   (resident)
            pl.BlockSpec((s_in, s_out), lambda i, j: (0, 0)),       # replication matrix
            pl.BlockSpec((None, c, s_in), lambda i, j: (i, 0, j)),      # x row chunk
            pl.BlockSpec((None, c_out, s_out), lambda i, j: (i, 0, j)), # skip chunk
        ],
        out_specs=pl.BlockSpec((None, c, s_out), lambda i, j: (i, 0, j)),
        compiler_params=pltpu.CompilerParams(
            dimension_semantics=("parallel", "parallel"),
            vmem_limit_bytes=32 * 1024 * 1024,
        ),
    )(weight, b2d, rmat, x_flat, fm_flat)

    return out_flat.reshape(n, c, h2, w2)


if __name__ == "__main__":
    key = jax.random.PRNGKey(0)
    k_x, k_fm, k_w, k_b = jax.random.split(key, 4)

    N, C, H, W = 2, 4, 16, 16          # channel=4  ->  C//2 = 2
    C_out = C // 2

    x = jax.random.normal(k_x, (N, C, H, W), dtype=jnp.float32)
    feature_map = jax.random.normal(k_fm, (N, C_out, 2 * H, 2 * W), dtype=jnp.float32)

    # Deterministic Conv2d(channel, channel//2, kernel_size=1) params,
    # mimicking PyTorch's default uniform(-1/sqrt(fan_in), 1/sqrt(fan_in)).
    bound = 1.0 / (C ** 0.5)
    weight = jax.random.uniform(k_w, (C_out, C), jnp.float32, -bound, bound)
    bias = jax.random.uniform(k_b, (C_out,), jnp.float32, -bound, bound)

    out = jax.jit(upsample_forward)(x, feature_map, weight, bias)
    out = jax.block_until_ready(out)
    assert out.shape == (N, C, 2 * H, 2 * W)

    # Pure-JAX reference (same math as the PyTorch forward).
    x_up = jnp.repeat(jnp.repeat(x, 2, axis=2), 2, axis=3)
    conv = jnp.einsum("oc,nchw->nohw", weight, x_up) + bias[None, :, None, None]
    ref = jnp.concatenate([conv, feature_map], axis=1)
    assert jnp.allclose(out, ref, atol=1e-4, rtol=1e-4)

    print("KERNEL_OK")
</pallas_src>

<mosaic_0001>
module attributes {stable_mosaic.version = 11 : i64} {
  func.func @_upsample_conv_cat_kernel(%arg0: i32, %arg1: i32, %arg2: memref<2x4xf32, #tpu.memory_space<vmem>>, %arg3: memref<2x1xf32, #tpu.memory_space<vmem>>, %arg4: memref<256x1024xf32, #tpu.memory_space<vmem>>, %arg5: memref<1x4x256xf32, #tpu.memory_space<vmem>>, %arg6: memref<1x2x1024xf32, #tpu.memory_space<vmem>>, %arg7: memref<1x4x1024xf32, #tpu.memory_space<vmem>>) attributes {dimension_semantics = [#tpu.dimension_semantics<parallel>, #tpu.dimension_semantics<parallel>], iteration_bounds = array<i64: 2, 1>, scalar_prefetch = 0 : i64, scratch_operands = 0 : i64, tpu.core_type = #tpu.core_type<tc>, window_params = [{pipeline_mode = #tpu.pipeline_mode<synchronous>, transform_indices = @transform_0, window_bounds = array<i64: 2, 4>}, {pipeline_mode = #tpu.pipeline_mode<synchronous>, transform_indices = @transform_1, window_bounds = array<i64: 2, 1>}, {pipeline_mode = #tpu.pipeline_mode<synchronous>, transform_indices = @transform_2, window_bounds = array<i64: 256, 1024>}, {transform_indices = @transform_3, window_bounds = array<i64: 1, 4, 256>}, {transform_indices = @transform_4, window_bounds = array<i64: 1, 2, 1024>}, {transform_indices = @transform_5, window_bounds = array<i64: 1, 4, 1024>}]} {
    %c0 = arith.constant 0 : index
    %c0_0 = arith.constant 0 : index
    %0 = vector.load %arg2[%c0, %c0_0] : memref<2x4xf32, #tpu.memory_space<vmem>>, vector<2x4xf32>
    %c0_1 = arith.constant 0 : index
    %c0_2 = arith.constant 0 : index
    %c0_3 = arith.constant 0 : index
    %1 = vector.load %arg5[%c0_1, %c0_2, %c0_3] : memref<1x4x256xf32, #tpu.memory_space<vmem>>, vector<1x4x256xf32>
    %2 = vector.shape_cast %1 : vector<1x4x256xf32> to vector<4x256xf32>
    %cst = arith.constant dense<0.000000e+00> : vector<2x256xf32>
    %3 = tpu.matmul %0, %2, %cst {dimension_numbers = #tpu.dot_dimension_numbers<[1], [0], [0], [1], [0, 0, 1, 1], [], []>} : vector<2x4xf32>, vector<4x256xf32>, vector<2x256xf32> -> vector<2x256xf32>
    %c0_4 = arith.constant 0 : index
    %c0_5 = arith.constant 0 : index
    %4 = vector.load %arg3[%c0_4, %c0_5] : memref<2x1xf32, #tpu.memory_space<vmem>>, vector<2x1xf32>
    %5 = vector.broadcast %4 : vector<2x1xf32> to vector<2x256xf32>
    %6 = arith.addf %3, %5 : vector<2x256xf32>
    %c0_6 = arith.constant 0 : index
    %c0_7 = arith.constant 0 : index
    %7 = vector.load %arg4[%c0_6, %c0_7] : memref<256x1024xf32, #tpu.memory_space<vmem>>, vector<256x1024xf32>
    %cst_8 = arith.constant dense<0.000000e+00> : vector<2x1024xf32>
    %8 = tpu.matmul %6, %7, %cst_8 {dimension_numbers = #tpu.dot_dimension_numbers<[1], [0], [0], [1], [0, 0, 1, 1], [], []>} : vector<2x256xf32>, vector<256x1024xf32>, vector<2x1024xf32> -> vector<2x1024xf32>
    %c0_9 = arith.constant 0 : index
    %c0_10 = arith.constant 0 : index
    %c0_11 = arith.constant 0 : index
    %9 = vector.load %arg7[%c0_9, %c0_10, %c0_11] : memref<1x4x1024xf32, #tpu.memory_space<vmem>>, vector<1x2x1024xf32>
    %10 = vector.shape_cast %9 : vector<1x2x1024xf32> to vector<2x1024xf32>
    %11 = vector.shape_cast %8 : vector<2x1024xf32> to vector<1x2x1024xf32>
    tpu.vector_store %arg7[%c0_9, %c0_10, %c0_11], %11 {strides = array<i32>} : memref<1x4x1024xf32, #tpu.memory_space<vmem>>, vector<1x2x1024xf32>,
    %c0_12 = arith.constant 0 : index
    %c0_13 = arith.constant 0 : index
    %c0_14 = arith.constant 0 : index
    %12 = vector.load %arg6[%c0_12, %c0_13, %c0_14] : memref<1x2x1024xf32, #tpu.memory_space<vmem>>, vector<1x2x1024xf32>
    %13 = vector.shape_cast %12 : vector<1x2x1024xf32> to vector<2x1024xf32>
    %c0_15 = arith.constant 0 : index
    %c2 = arith.constant 2 : index
    %c0_16 = arith.constant 0 : index
    %14 = vector.load %arg7[%c0_15, %c2, %c0_16] : memref<1x4x1024xf32, #tpu.memory_space<vmem>>, vector<1x2x1024xf32>
    %15 = vector.shape_cast %14 : vector<1x2x1024xf32> to vector<2x1024xf32>
    %16 = vector.shape_cast %13 : vector<2x1024xf32> to vector<1x2x1024xf32>
    tpu.vector_store %arg7[%c0_15, %c2, %c0_16], %16 {strides = array<i32>} : memref<1x4x1024xf32, #tpu.memory_space<vmem>>, vector<1x2x1024xf32>,
    return
  }
  func.func @transform_0(%arg0: i32, %arg1: i32) -> (i32, i32) {
    %c0_i32 = arith.constant 0 : i32
    %c0_i32_0 = arith.constant 0 : i32
    %c0_i32_1 = arith.constant 0 : i32
    return %c0_i32, %c0_i32_0 : i32, i32
  }
  func.func @transform_1(%arg0: i32, %arg1: i32) -> (i32, i32) {
    %c0_i32 = arith.constant 0 : i32
    %c0_i32_0 = arith.constant 0 : i32
    %c0_i32_1 = arith.constant 0 : i32
    return %c0_i32, %c0_i32_0 : i32, i32
  }
  func.func @transform_2(%arg0: i32, %arg1: i32) -> (i32, i32) {
    %c0_i32 = arith.constant 0 : i32
    %c0_i32_0 = arith.constant 0 : i32
    %c0_i32_1 = arith.constant 0 : i32
    return %c0_i32, %c0_i32_0 : i32, i32
  }
  func.func @transform_3(%arg0: i32, %arg1: i32) -> (i32, i32, i32) {
    %c0_i32 = arith.constant 0 : i32
    %c0_i32_0 = arith.constant 0 : i32
    return %arg0, %c0_i32, %arg1 : i32, i32, i32
  }
  func.func @transform_4(%arg0: i32, %arg1: i32) -> (i32, i32, i32) {
    %c0_i32 = arith.constant 0 : i32
    %c0_i32_0 = arith.constant 0 : i32
    return %arg0, %c0_i32, %arg1 : i32, i32, i32
  }
  func.func @transform_5(%arg0: i32, %arg1: i32) -> (i32, i32, i32) {
    %c0_i32 = arith.constant 0 : i32
    %c0_i32_0 = arith.constant 0 : i32
    return %arg0, %c0_i32, %arg1 : i32, i32, i32
  }
}

</mosaic_0001>

<llo_original>
// kernel: upsample_forward.1
$region0: #{upsample_forward.1}
  #allocation0 [shape = 'u32[]', space=smem, size = 0x4, offset = 0x4, fixed_abs, tag = 'smem constant byte address 0x4 - core index']
  #allocation1 [shape = 'u32[144,128]{1,0:T(1,128)}', space=vmem, size = 0x12000, scoped, tag = 'internal scratch']
  %s0 = inlined_call_operand.vmem [shape: f32[2,4], index: 0, kind: input, shape index: {}]
  %s1 = inlined_call_operand.vmem [shape: f32[2,1], index: 1, kind: input, shape index: {}]
  %s2 = inlined_call_operand.vmem [shape: f32[256,1024], index: 2, kind: input, shape index: {}]
  %s3 = inlined_call_operand.vmem [shape: f32[2,4,256], index: 3, kind: input, shape index: {}]
  %s4 = inlined_call_operand.vmem [shape: f32[2,2,1024], index: 4, kind: input, shape index: {}]
  %s5 = inlined_call_operand.vmem [shape: f32[2,4,1024], index: 5, kind: output, shape index: {}]
  %s6 = sld [smem:[#allocation0]]
  $region53: #{upsample_forward.1} parent=0
    _
  %s8 = ssub.s32 1, %s6
  %s9 = scalar_select 0, %s8, %s6
  loop: start=0, step=1, limit=4
  $region2: #{upsample_forward.1} parent=0 // loop_pre_header
    _
  $region3: #{upsample_forward.1} parent=0 // loop_header
    %s11 = sphi 0, %s15
    %p12 = scmp.ge.s32.totalorder %s11, 4
    %s18 = sphi 0, %s30
    %s19 = sphi 0, %s26
    %s20 = sphi 0, %s18
    %s21 = sphi 0, %s19
    %s22 = sphi 0, %s20
    %s23 = sphi 0, %s21
    %s31 = sphi 0, %s31
    %s33 = sphi 0, %s31
    %s34 = sphi 0, %s33
    %s48 = sphi 0, %s34
    %s52 = sphi 0, %s52
    %s54 = sphi 0, %s52
    %s55 = sphi 0, %s54
    %s69 = sphi 0, %s55
    %s73 = sphi 0, %s73
    %s75 = sphi 0, %s73
    %s76 = sphi 0, %s75
    %s90 = sphi 0, %s76
    %s98 = sphi 0, %s100
    %s101 = sphi 0, %s98
    %s102 = sphi 0, %s101
    %s118 = sphi 0, %s102
    %s126 = sphi 0, %s128
    %s129 = sphi 0, %s126
    %s130 = sphi 0, %s129
    %s146 = sphi 0, %s130
    %s154 = sphi 0, %s156
    %s157 = sphi 0, %s154
    %s158 = sphi 0, %s157
    %s174 = sphi 0, %s158
  $region4: #{upsample_forward.1} parent=0 // loop_header_branch
    %14 = sbr.rel (%p12) target = $region8
  $region5: #{upsample_forward.1} parent=0 // loop_body
    %s16 = ssub.s32 %s11, 1
    %s17 = ssub.s32 %s11, 2
    %s24 = sadd.s32 1, %s19
    %p25 = scmp.ge.s32.totalorder %s24, 1
    %s26 = scalar_select %p25, 0, %s24
    %s27 = sadd.s32 1, %s18
    %s28 = scalar_select %p25, %s27, %s18
    %p29 = scmp.ge.s32.totalorder %s28, 2
    %s30 = scalar_select %p29, 0, %s28
    %s32 = sadd.s32 %s31, 1
    %p35 = scmp.eq.s32.totalorder %s11, 1
    %p36 = scmp.ne.s32.totalorder %s31, %s33
    %p37 = scmp.eq.s32.totalorder %s11, 0
    %p38 = por %p36, %p37
    %p39 = scmp.ne.s32.totalorder %s31, %s33
    %p40 = scmp.eq.s32.totalorder %s16, 1
    %p41 = por %p39, %p40
    %p42 = scmp.ne.s32.totalorder %s33, %s34
    %p43 = scmp.eq.s32.totalorder %s16, 0
    %p44 = por %p42, %p43
    %p45 = scmp.ne.s32.totalorder %s33, %s34
    %p46 = scmp.eq.s32.totalorder %s17, 1
    %p47 = por %p45, %p46
    %p49 = scmp.ne.s32.totalorder %s34, %s48
    %p50 = scmp.eq.s32.totalorder %s17, 0
    %p51 = por %p49, %p50
    %s53 = sadd.s32 %s52, 1
    %p56 = scmp.eq.s32.totalorder %s11, 1
    %p57 = scmp.ne.s32.totalorder %s52, %s54
    %p58 = scmp.eq.s32.totalorder %s11, 0
    %p59 = por %p57, %p58
    %p60 = scmp.ne.s32.totalorder %s52, %s54
    %p61 = scmp.eq.s32.totalorder %s16, 1
    %p62 = por %p60, %p61
    %p63 = scmp.ne.s32.totalorder %s54, %s55
    %p64 = scmp.eq.s32.totalorder %s16, 0
    %p65 = por %p63, %p64
    %p66 = scmp.ne.s32.totalorder %s54, %s55
    %p67 = scmp.eq.s32.totalorder %s17, 1
    %p68 = por %p66, %p67
    %p70 = scmp.ne.s32.totalorder %s55, %s69
    %p71 = scmp.eq.s32.totalorder %s17, 0
    %p72 = por %p70, %p71
    %s74 = sadd.s32 %s73, 1
    %p77 = scmp.eq.s32.totalorder %s11, 1
    %p78 = scmp.ne.s32.totalorder %s73, %s75
    %p79 = scmp.eq.s32.totalorder %s11, 0
    %p80 = por %p78, %p79
    %p81 = scmp.ne.s32.totalorder %s73, %s75
    %p82 = scmp.eq.s32.totalorder %s16, 1
    %p83 = por %p81, %p82
    %p84 = scmp.ne.s32.totalorder %s75, %s76
    %p85 = scmp.eq.s32.totalorder %s16, 0
    %p86 = por %p84, %p85
    %p87 = scmp.ne.s32.totalorder %s75, %s76
    %p88 = scmp.eq.s32.totalorder %s17, 1
    %p89 = por %p87, %p88
    %p91 = scmp.ne.s32.totalorder %s76, %s90
    %p92 = scmp.eq.s32.totalorder %s17, 0
    %p93 = por %p91, %p92
    %s94 = ssub.s32 %s18, %s30
    %s95 = ssub.s32 %s19, %s26
    %s96 = sor.u32 %s94, %s95
    %p97 = scmp.eq.s32.totalorder %s96, 0
    %s99 = sadd.s32 %s98, 1
    %s100 = scalar_select %p97, %s98, %s99
    %p103 = pneg %p97
    %p104 = scmp.eq.s32.totalorder %s11, 1
    %p105 = por %p103, %p104
    %p106 = scmp.ne.s32.totalorder %s98, %s101
    %p107 = scmp.eq.s32.totalorder %s11, 0
    %p108 = por %p106, %p107
    %p109 = scmp.ne.s32.totalorder %s98, %s101
    %p110 = scmp.eq.s32.totalorder %s16, 1
    %p111 = por %p109, %p110
    %p112 = scmp.ne.s32.totalorder %s101, %s102
    %p113 = scmp.eq.s32.totalorder %s16, 0
    %p114 = por %p112, %p113
    %p115 = scmp.ne.s32.totalorder %s101, %s102
    %p116 = scmp.eq.s32.totalorder %s17, 1
    %p117 = por %p115, %p116
    %p119 = scmp.ne.s32.totalorder %s102, %s118
    %p120 = scmp.eq.s32.totalorder %s17, 0
    %p121 = por %p119, %p120
    %s122 = ssub.s32 %s18, %s30
    %s123 = ssub.s32 %s19, %s26
    %s124 = sor.u32 %s122, %s123
    %p125 = scmp.eq.s32.totalorder %s124, 0
    %s127 = sadd.s32 %s126, 1
    %s128 = scalar_select %p125, %s126, %s127
    %p131 = pneg %p125
    %p132 = scmp.eq.s32.totalorder %s11, 1
    %p133 = por %p131, %p132
    %p134 = scmp.ne.s32.totalorder %s126, %s129
    %p135 = scmp.eq.s32.totalorder %s11, 0
    %p136 = por %p134, %p135
    %p137 = scmp.ne.s32.totalorder %s126, %s129
    %p138 = scmp.eq.s32.totalorder %s16, 1
    %p139 = por %p137, %p138
    %p140 = scmp.ne.s32.totalorder %s129, %s130
    %p141 = scmp.eq.s32.totalorder %s16, 0
    %p142 = por %p140, %p141
    %p143 = scmp.ne.s32.totalorder %s129, %s130
    %p144 = scmp.eq.s32.totalorder %s17, 1
    %p145 = por %p143, %p144
    %p147 = scmp.ne.s32.totalorder %s130, %s146
    %p148 = scmp.eq.s32.totalorder %s17, 0
    %p149 = por %p147, %p148
    %s150 = ssub.s32 %s18, %s30
    %s151 = ssub.s32 %s19, %s26
    %s152 = sor.u32 %s150, %s151
    %p153 = scmp.eq.s32.totalorder %s152, 0
    %s155 = sadd.s32 %s154, 1
    %s156 = scalar_select %p153, %s154, %s155
    %p159 = pneg %p153
    %p160 = scmp.eq.s32.totalorder %s11, 1
    %p161 = por %p159, %p160
    %p162 = scmp.ne.s32.totalorder %s154, %s157
    %p163 = scmp.eq.s32.totalorder %s11, 0
    %p164 = por %p162, %p163
    %p165 = scmp.ne.s32.totalorder %s154, %s157
    %p166 = scmp.eq.s32.totalorder %s16, 1
    %p167 = por %p165, %p166
    %p168 = scmp.ne.s32.totalorder %s157, %s158
    %p169 = scmp.eq.s32.totalorder %s16, 0
    %p170 = por %p168, %p169
    %p171 = scmp.ne.s32.totalorder %s157, %s158
    %p172 = scmp.eq.s32.totalorder %s17, 1
    %p173 = por %p171, %p172
    %p175 = scmp.ne.s32.totalorder %s158, %s174
    %p176 = scmp.eq.s32.totalorder %s17, 0
    %p177 = por %p175, %p176
    %p178 = scmp.le.s32.totalorder 1, %s11
    %p179 = scmp.lt.s32.totalorder %s11, 3
    %p180 = pnand %p178, %p179
    %p181 = pneg %p180
    // Predicated region
    $region9: #{upsample_forward.1} parent=5 // pred_check
      _
    $region10: #{upsample_forward.1} parent=5 // pred_check_branch
      %183 = sbr.rel (%p180) target = $region12
    $region11: #{upsample_forward.1} parent=5 // pred_region
      %s184 = ssub.s32 %s11, 1
      // Predicated region
      $region13: #{upsample_forward.1} parent=11 // pred_check
        %p185 = pneg %p44
      $region14: #{upsample_forward.1} parent=11 // pred_check_branch
        %187 = sbr.rel (%p185) target = $region16
      $region15: #{upsample_forward.1} parent=11 // pred_region
        _
      $region16: #{upsample_forward.1} parent=11 // pred_fallthru
        _
      // Predicated region
      $region17: #{upsample_forward.1} parent=11 // pred_check
        %p188 = pneg %p65
      $region18: #{upsample_forward.1} parent=11 // pred_check_branch
        %190 = sbr.rel (%p188) target = $region20
      $region19: #{upsample_forward.1} parent=11 // pred_region
        _
      $region20: #{upsample_forward.1} parent=11 // pred_fallthru
        _
      // Predicated region
      $region21: #{upsample_forward.1} parent=11 // pred_check
        %p191 = pneg %p86
      $region22: #{upsample_forward.1} parent=11 // pred_check_branch
        %193 = sbr.rel (%p191) target = $region24
      $region23: #{upsample_forward.1} parent=11 // pred_region
        _
      $region24: #{upsample_forward.1} parent=11 // pred_fallthru
        _
    $region12: #{upsample_forward.1} parent=5 // pred_fallthru
      _
    %p194 = scmp.lt.s32.totalorder %s11, 2
    // Predicated region
    $region25: #{upsample_forward.1} parent=5 // pred_check
      %p195 = pneg %p194
    $region26: #{upsample_forward.1} parent=5 // pred_check_branch
      %197 = sbr.rel (%p195) target = $region28
    $region27: #{upsample_forward.1} parent=5 // pred_region
      // Predicated region
      $region29: #{upsample_forward.1} parent=27 // pred_check
        %p198 = pneg %p108
      $region30: #{upsample_forward.1} parent=27 // pred_check_branch
        %200 = sbr.rel (%p198) target = $region32
      $region31: #{upsample_forward.1} parent=27 // pred_region
        %s201 = smul.u32 2, %s19
        %p202 = scmp.lt.s32.totalorder %s18, 1
        %s203 = scalar_select %p202, %s18, 1
        %p204 = scmp.lt.s32.totalorder %s201, 1
        %s205 = scalar_select %p204, %s201, 1
        %s206 = smul.addr %s203, 2
        %s207 = sadd.s32 %s205, %s206
        %s208 = smul.addr %s207, 4
        %s209 = scalar_lea.vmem %s3, %s208
        %s210 = smul.u32 2, %s19
      $region32: #{upsample_forward.1} parent=27 // pred_fallthru
        _
      // Predicated region
      $region33: #{upsample_forward.1} parent=27 // pred_check
        %p211 = pneg %p136
      $region34: #{upsample_forward.1} parent=27 // pred_check_branch
        %213 = sbr.rel (%p211) target = $region36
      $region35: #{upsample_forward.1} parent=27 // pred_region
        %s214 = smul.u32 8, %s19
        %p215 = scmp.lt.s32.totalorder %s18, 1
        %s216 = scalar_select %p215, %s18, 1
        %p217 = scmp.lt.s32.totalorder %s214, 7
        %s218 = scalar_select %p217, %s214, 7
        %s219 = smul.addr %s216, 8
        %s220 = sadd.s32 %s218, %s219
        %s221 = smul.addr %s220, 2
        %s222 = scalar_lea.vmem %s4, %s221
        %s223 = smul.u32 8, %s19
      $region36: #{upsample_forward.1} parent=27 // pred_fallthru
        _
    $region28: #{upsample_forward.1} parent=5 // pred_fallthru
      _
    %p224 = scmp.le.s32.totalorder 1, %s11
    %p225 = scmp.lt.s32.totalorder %s11, 3
    %p226 = pnand %p224, %p225
    %p227 = pneg %p226
    // Predicated region
    $region37: #{upsample_forward.1} parent=5 // pred_check
      _
    $region38: #{upsample_forward.1} parent=5 // pred_check_branch
      %229 = sbr.rel (%p226) target = $region40
    $region39: #{upsample_forward.1} parent=5 // pred_region
      %s230 = ssub.s32 %s11, 1
      %p231 = pneg %p44
      %p232 = pneg %p41
      %p233 = pneg %p65
      %p234 = pneg %p62
      %p235 = pneg %p86
      %p236 = pneg %p83
      %s237 = smul.u32 2, %s21
      %p238 = scmp.lt.s32.totalorder %s20, 1
      %s239 = scalar_select %p238, %s20, 1
      %p240 = scmp.lt.s32.totalorder %s237, 1
      %s241 = scalar_select %p240, %s237, 1
      %s242 = smul.addr %s239, 2
      %s243 = sadd.s32 %s241, %s242
      %s244 = smul.addr %s243, 4
      %s245 = scalar_lea.vmem %s3, %s244
      %p246 = pneg %p114
      %p247 = pneg %p111
      %s248 = smul.u32 8, %s21
      %p249 = scmp.lt.s32.totalorder %s20, 1
      %s250 = scalar_select %p249, %s20, 1
      %p251 = scmp.lt.s32.totalorder %s248, 7
      %s252 = scalar_select %p251, %s248, 7
      %s253 = smul.addr %s250, 8
      %s254 = sadd.s32 %s252, %s253
      %s255 = smul.addr %s254, 2
      %s256 = scalar_lea.vmem %s4, %s255
      %p257 = pneg %p142
      %p258 = pneg %p139
      %p259 = pneg %p170
      %p260 = pneg %p167
      %s261 = smul.u32 8, %s21
      %p262 = scmp.lt.s32.totalorder %s20, 1
      %s263 = scalar_select %p262, %s20, 1
      %p264 = scmp.lt.s32.totalorder %s261, 7
      %s265 = scalar_select %p264, %s261, 7
      %s266 = smul.addr %s263, 8
      %s267 = sadd.s32 %s265, %s266
      %s268 = smul.addr %s267, 4
      %s269 = scalar_lea.vmem %s5, %s268
      %s270 = smul.u32 2, %s21
      %p271 = scmp.lt.s32.totalorder %s20, 1
      %s272 = scalar_select %p271, %s20, 1
      %p273 = scmp.lt.s32.totalorder %s270, 1
      %s274 = scalar_select %p273, %s270, 1
      %s275 = smul.addr %s272, 2
      %s276 = sadd.s32 %s274, %s275
      %s277 = smul.addr %s276, 4
      %s278 = scalar_lea.vmem %s3, %s277
      %s279 = smul.u32 2, %s21
      %s280 = smul.u32 8, %s21
      %p281 = scmp.lt.s32.totalorder %s20, 1
      %s282 = scalar_select %p281, %s20, 1
      %p283 = scmp.lt.s32.totalorder %s280, 7
      %s284 = scalar_select %p283, %s280, 7
      %s285 = smul.addr %s282, 8
      %s286 = sadd.s32 %s284, %s285
      %s287 = smul.addr %s286, 2
      %s288 = scalar_lea.vmem %s4, %s287
      %s289 = smul.u32 8, %s21
      %s290 = smul.u32 8, %s21
      %p291 = scmp.lt.s32.totalorder %s20, 1
      %s292 = scalar_select %p291, %s20, 1
      %p293 = scmp.lt.s32.totalorder %s290, 7
      %s294 = scalar_select %p293, %s290, 7
      %s295 = smul.addr %s292, 8
      %s296 = sadd.s32 %s294, %s295
      %s297 = smul.addr %s296, 4
      %s298 = scalar_lea.vmem %s5, %s297
      %s299 = smul.u32 8, %s21
      %v300 = vld [vmem:[%s0] sm:$0x3]
      %v301 = vld [vmem:[%s278] sm:$0xff]
      %v302 = vld [vmem:[%s1] sm:$0x3]
      %304 = vset.pattern.permute.xlu0 0
      %305 = vperm.xlu0 %304, %v302
      %v306 = vpop.permute.xlu0 %305
      %v309 = vcombine.high %v301, %v301
      %vm310 = vcmask 31744
      %v312 = vsel %vm310, %v300, 0
      %vm314 = vcmask 1043456
      %v315 = vsel %vm314, %v301, 0
      %v317 = vsel %vm314, %v309, 0
      %319 = vmatprep.subr.mxu0 0.0
      %320 = vmatpush1.msra.mxu0 0.0
      %321 = vmatprep.subr.mxu0 0.0
      %322 = vmatpush1.msra.mxu0 0.0
      %323 = vmatprep.subr.mxu0 0.0
      %324 = vmatpush1.msra.mxu0 0.0
      %325 = vmatprep.subr.mxu0 0.0
      %326 = vmatpush1.msra.mxu0 0.0
      %327 = vmatprep.subr.mxu0 0.0
      %328 = vmatpush1.msra.mxu0 0.0
      %329 = vmatprep.subr.mxu0 0.0
      %330 = vmatpush1.msra.mxu0 0.0
      %331 = vmatprep.subr.mxu0 0.0
      %332 = vmatpush1.msra.mxu0 0.0
      %333 = vmatprep.subr.mxu0 0.0
      %334 = vmatpush1.msra.mxu0 0.0
      %335 = vmatprep.subr.mxu0 0.0
      %336 = vmatpush1.msra.mxu0 0.0
      %337 = vmatprep.subr.mxu0 0.0
      %338 = vmatpush1.msra.mxu0 0.0
      %339 = vmatprep.subr.mxu0 0.0
      %340 = vmatpush1.msra.mxu0 0.0
      %341 = vmatprep.subr.mxu0 0.0
      %342 = vmatpush1.msra.mxu0 0.0
      %343 = vmatprep.subr.mxu0 0.0
      %344 = vmatpush1.msra.mxu0 0.0
      %345 = vmatprep.subr.mxu0 0.0
      %346 = vmatpush1.msra.mxu0 0.0
      %347 = vmatprep.subr.mxu0 0.0
      %348 = vmatpush1.msra.mxu0 0.0
      %349 = vmatprep.subr.mxu0 %v317
      %350 = vmatpush1.msra.mxu0 %v315
      %351 = vmatprep.subr.mxu0 0.0
      %352 = vmatpush2.msra.mxu0 0.0
      %353 = vmatprep.subr.mxu0 0.0
      %354 = vmatpush2.msra.mxu0 0.0
      %355 = vmatprep.subr.mxu0 0.0
      %356 = vmatpush2.msra.mxu0 0.0
      %357 = vmatprep.subr.mxu0 0.0
      %358 = vmatpush2.msra.mxu0 0.0
      %359 = vmatprep.subr.mxu0 0.0
      %360 = vmatpush2.msra.mxu0 0.0
      %361 = vmatprep.subr.mxu0 0.0
      %362 = vmatpush2.msra.mxu0 0.0
      %363 = vmatprep.subr.mxu0 0.0
      %364 = vmatpush2.msra.mxu0 0.0
      %365 = vmatprep.subr.mxu0 0.0
      %366 = vmatpush2.msra.mxu0 0.0
      %367 = vmatprep.subr.mxu0 0.0
      %368 = vmatpush2.msra.mxu0 0.0
      %369 = vmatprep.subr.mxu0 0.0
      %370 = vmatpush2.msra.mxu0 0.0
      %371 = vmatprep.subr.mxu0 0.0
      %372 = vmatpush2.msra.mxu0 0.0
      %373 = vmatprep.subr.mxu0 0.0
      %374 = vmatpush2.msra.mxu0 0.0
      %375 = vmatprep.subr.mxu0 0.0
      %376 = vmatpush2.msra.mxu0 0.0
      %377 = vmatprep.subr.mxu0 0.0
      %378 = vmatpush2.msra.mxu0 0.0
      %379 = vmatprep.subr.mxu0 0.0
      %380 = vmatpush2.msra.mxu0 0.0
      %381 = vmatprep.subr.mxu0 0.0
      %382 = vmatpush2.msra.mxu0 0.0
      %383 = vmatprep.mubr.f32.mxu0 0.0
      %384 = vmatmul.mubr.f32.gmra.mxu0 %v312
      %v385 = vpop.f32.mrf.mxu0
      %v386 = vadd.f32 %v306, %v385
      %v387 = vpop.f32.mrf.mxu0
      %v388 = vadd.f32 %v306, %v387
      %389 = vdwg.mxu0
      %v390 = vld [vmem:[%s2] sm:$0xff]
      %v391 = vld [vmem:[%s2 + $0x8] sm:$0xff]
      %v392 = vld [vmem:[%s2 + $0x10] sm:$0xff]
      %v393 = vld [vmem:[%s2 + $0x18] sm:$0xff]
      %v394 = vld [vmem:[%s2 + $0x20] sm:$0xff]
      %v395 = vld [vmem:[%s2 + $0x28] sm:$0xff]
      %v396 = vld [vmem:[%s2 + $0x30] sm:$0xff]
      %v397 = vld [vmem:[%s2 + $0x38] sm:$0xff]
      %v398 = vld [vmem:[%s2 + $0x40] sm:$0xff]
      %v399 = vld [vmem:[%s2 + $0x48] sm:$0xff]
      %v400 = vld [vmem:[%s2 + $0x50] sm:$0xff]
      %v401 = vld [vmem:[%s2 + $0x58] sm:$0xff]
      %v402 = vld [vmem:[%s2 + $0x60] sm:$0xff]
      %v403 = vld [vmem:[%s2 + $0x68] sm:$0xff]
      %v404 = vld [vmem:[%s2 + $0x70] sm:$0xff]
      %v405 = vld [vmem:[%s2 + $0x78] sm:$0xff]
      %v406 = vld [vmem:[%s2 + $0x80] sm:$0xff]
      %v407 = vld [vmem:[%s2 + $0x88] sm:$0xff]
      %v408 = vld [vmem:[%s2 + $0x90] sm:$0xff]
      %v409 = vld [vmem:[%s2 + $0x98] sm:$0xff]
      %v410 = vld [vmem:[%s2 + $0xa0] sm:$0xff]
      %v411 = vld [vmem:[%s2 + $0xa8] sm:$0xff]
      %v412 = vld [vmem:[%s2 + $0xb0] sm:$0xff]
      %v413 = vld [vmem:[%s2 + $0xb8] sm:$0xff]
      %v414 = vld [vmem:[%s2 + $0xc0] sm:$0xff]
      %v415 = vld [vmem:[%s2 + $0xc8] sm:$0xff]
      %v416 = vld [vmem:[%s2 + $0xd0] sm:$0xff]
      %v417 = vld [vmem:[%s2 + $0xd8] sm:$0xff]
      %v418 = vld [vmem:[%s2 + $0xe0] sm:$0xff]
      %v419 = vld [vmem:[%s2 + $0xe8] sm:$0xff]
      %v420 = vld [vmem:[%s2 + $0xf0] sm:$0xff]
      %v421 = vld [vmem:[%s2 + $0xf8] sm:$0xff]
      %v422 = vld [vmem:[%s2 + $0x100] sm:$0xff]
      %v423 = vld [vmem:[%s2 + $0x108] sm:$0xff]
      %v424 = vld [vmem:[%s2 + $0x110] sm:$0xff]
      %v425 = vld [vmem:[%s2 + $0x118] sm:$0xff]
      %v426 = vld [vmem:[%s2 + $0x120] sm:$0xff]
      %v427 = vld [vmem:[%s2 + $0x128] sm:$0xff]
      %v428 = vld [vmem:[%s2 + $0x130] sm:$0xff]
      %v429 = vld [vmem:[%s2 + $0x138] sm:$0xff]
      %v430 = vld [vmem:[%s2 + $0x140] sm:$0xff]
      %v431 = vld [vmem:[%s2 + $0x148] sm:$0xff]
      %v432 = vld [vmem:[%s2 + $0x150] sm:$0xff]
      %v433 = vld [vmem:[%s2 + $0x158] sm:$0xff]
      %v434 = vld [vmem:[%s2 + $0x160] sm:$0xff]
      %v435 = vld [vmem:[%s2 + $0x168] sm:$0xff]
      %v436 = vld [vmem:[%s2 + $0x170] sm:$0xff]
      %v437 = vld [vmem:[%s2 + $0x178] sm:$0xff]
      %v438 = vld [vmem:[%s2 + $0x180] sm:$0xff]
      %v439 = vld [vmem:[%s2 + $0x188] sm:$0xff]
      %v440 = vld [vmem:[%s2 + $0x190] sm:$0xff]
      %v441 = vld [vmem:[%s2 + $0x198] sm:$0xff]
      %v442 = vld [vmem:[%s2 + $0x1a0] sm:$0xff]
      %v443 = vld [vmem:[%s2 + $0x1a8] sm:$0xff]
      %v444 = vld [vmem:[%s2 + $0x1b0] sm:$0xff]
      %v445 = vld [vmem:[%s2 + $0x1b8] sm:$0xff]
      %v446 = vld [vmem:[%s2 + $0x1c0] sm:$0xff]
      %v447 = vld [vmem:[%s2 + $0x1c8] sm:$0xff]
      %v448 = vld [vmem:[%s2 + $0x1d0] sm:$0xff]
      %v449 = vld [vmem:[%s2 + $0x1d8] sm:$0xff]
      %v450 = vld [vmem:[%s2 + $0x1e0] sm:$0xff]
      %v451 = vld [vmem:[%s2 + $0x1e8] sm:$0xff]
      %v452 = vld [vmem:[%s2 + $0x1f0] sm:$0xff]
      %v453 = vld [vmem:[%s2 + $0x1f8] sm:$0xff]
      %v454 = vld [vmem:[%s2 + $0x200] sm:$0xff]
      %v455 = vld [vmem:[%s2 + $0x208] sm:$0xff]
      %v456 = vld [vmem:[%s2 + $0x210] sm:$0xff]
      %v457 = vld [vmem:[%s2 + $0x218] sm:$0xff]
      %v458 = vld [vmem:[%s2 + $0x220] sm:$0xff]
      %v459 = vld [vmem:[%s2 + $0x228] sm:$0xff]
      %v460 = vld [vmem:[%s2 + $0x230] sm:$0xff]
      %v461 = vld [vmem:[%s2 + $0x238] sm:$0xff]
      %v462 = vld [vmem:[%s2 + $0x240] sm:$0xff]
      %v463 = vld [vmem:[%s2 + $0x248] sm:$0xff]
      %v464 = vld [vmem:[%s2 + $0x250] sm:$0xff]
      %v465 = vld [vmem:[%s2 + $0x258] sm:$0xff]
      %v466 = vld [vmem:[%s2 + $0x260] sm:$0xff]
      %v467 = vld [vmem:[%s2 + $0x268] sm:$0xff]
      %v468 = vld [vmem:[%s2 + $0x270] sm:$0xff]
      %v469 = vld [vmem:[%s2 + $0x278] sm:$0xff]
      %v470 = vld [vmem:[%s2 + $0x280] sm:$0xff]
      %v471 = vld [vmem:[%s2 + $0x288] sm:$0xff]
      %v472 = vld [vmem:[%s2 + $0x290] sm:$0xff]
      %v473 = vld [vmem:[%s2 + $0x298] sm:$0xff]
      %v474 = vld [vmem:[%s2 + $0x2a0] sm:$0xff]
      %v475 = vld [vmem:[%s2 + $0x2a8] sm:$0xff]
      %v476 = vld [vmem:[%s2 + $0x2b0] sm:$0xff]
      %v477 = vld [vmem:[%s2 + $0x2b8] sm:$0xff]
      %v478 = vld [vmem:[%s2 + $0x2c0] sm:$0xff]
      %v479 = vld [vmem:[%s2 + $0x2c8] sm:$0xff]
      %v480 = vld [vmem:[%s2 + $0x2d0] sm:$0xff]
      %v481 = vld [vmem:[%s2 + $0x2d8] sm:$0xff]
      %v482 = vld [vmem:[%s2 + $0x2e0] sm:$0xff]
      %v483 = vld [vmem:[%s2 + $0x2e8] sm:$0xff]
      %v484 = vld [vmem:[%s2 + $0x2f0] sm:$0xff]
      %v485 = vld [vmem:[%s2 + $0x2f8] sm:$0xff]
      %v486 = vld [vmem:[%s2 + $0x300] sm:$0xff]
      %v487 = vld [vmem:[%s2 + $0x308] sm:$0xff]
      %v488 = vld [vmem:[%s2 + $0x310] sm:$0xff]
      %v489 = vld [vmem:[%s2 + $0x318] sm:$0xff]
      %v490 = vld [vmem:[%s2 + $0x320] sm:$0xff]
      %v491 = vld [vmem:[%s2 + $0x328] sm:$0xff]
      %v492 = vld [vmem:[%s2 + $0x330] sm:$0xff]
      %v493 = vld [vmem:[%s2 + $0x338] sm:$0xff]
      %v494 = vld [vmem:[%s2 + $0x340] sm:$0xff]
      %v495 = vld [vmem:[%s2 + $0x348] sm:$0xff]
      %v496 = vld [vmem:[%s2 + $0x350] sm:$0xff]
      %v497 = vld [vmem:[%s2 + $0x358] sm:$0xff]
      %v498 = vld [vmem:[%s2 + $0x360] sm:$0xff]
      %v499 = vld [vmem:[%s2 + $0x368] sm:$0xff]
      %v500 = vld [vmem:[%s2 + $0x370] sm:$0xff]
      %v501 = vld [vmem:[%s2 + $0x378] sm:$0xff]
      %v502 = vld [vmem:[%s2 + $0x380] sm:$0xff]
      %v503 = vld [vmem:[%s2 + $0x388] sm:$0xff]
      %v504 = vld [vmem:[%s2 + $0x390] sm:$0xff]
      %v505 = vld [vmem:[%s2 + $0x398] sm:$0xff]
      %v506 = vld [vmem:[%s2 + $0x3a0] sm:$0xff]
      %v507 = vld [vmem:[%s2 + $0x3a8] sm:$0xff]
      %v508 = vld [vmem:[%s2 + $0x3b0] sm:$0xff]
      %v509 = vld [vmem:[%s2 + $0x3b8] sm:$0xff]
      %v510 = vld [vmem:[%s2 + $0x3c0] sm:$0xff]
      %v511 = vld [vmem:[%s2 + $0x3c8] sm:$0xff]
      %v512 = vld [vmem:[%s2 + $0x3d0] sm:$0xff]
      %v513 = vld [vmem:[%s2 + $0x3d8] sm:$0xff]
      %v514 = vld [vmem:[%s2 + $0x3e0] sm:$0xff]
      %v515 = vld [vmem:[%s2 + $0x3e8] sm:$0xff]
      %v516 = vld [vmem:[%s2 + $0x3f0] sm:$0xff]
      %v517 = vld [vmem:[%s2 + $0x3f8] sm:$0xff]
      %v518 = vld [vmem:[%s2 + $0x400] sm:$0xff]
      %v519 = vld [vmem:[%s2 + $0x408] sm:$0xff]
      %v520 = vld [vmem:[%s2 + $0x410] sm:$0xff]
      %v521 = vld [vmem:[%s2 + $0x418] sm:$0xff]
      %v522 = vld [vmem:[%s2 + $0x420] sm:$0xff]
      %v523 = vld [vmem:[%s2 + $0x428] sm:$0xff]
      %v524 = vld [vmem:[%s2 + $0x430] sm:$0xff]
      %v525 = vld [vmem:[%s2 + $0x438] sm:$0xff]
      %v526 = vld [vmem:[%s2 + $0x440] sm:$0xff]
      %v527 = vld [vmem:[%s2 + $0x448] sm:$0xff]
      %v528 = vld [vmem:[%s2 + $0x450] sm:$0xff]
      %v529 = vld [vmem:[%s2 + $0x458] sm:$0xff]
      %v530 = vld [vmem:[%s2 + $0x460] sm:$0xff]
      %v531 = vld [vmem:[%s2 + $0x468] sm:$0xff]
      %v532 = vld [vmem:[%s2 + $0x470] sm:$0xff]
      %v533 = vld [vmem:[%s2 + $0x478] sm:$0xff]
      %v534 = vld [vmem:[%s2 + $0x480] sm:$0xff]
      %v535 = vld [vmem:[%s2 + $0x488] sm:$0xff]
      %v536 = vld [vmem:[%s2 + $0x490] sm:$0xff]
      %v537 = vld [vmem:[%s2 + $0x498] sm:$0xff]
      %v538 = vld [vmem:[%s2 + $0x4a0] sm:$0xff]
      %v539 = vld [vmem:[%s2 + $0x4a8] sm:$0xff]
      %v540 = vld [vmem:[%s2 + $0x4b0] sm:$0xff]
      %v541 = vld [vmem:[%s2 + $0x4b8] sm:$0xff]
      %v542 = vld [vmem:[%s2 + $0x4c0] sm:$0xff]
      %v543 = vld [vmem:[%s2 + $0x4c8] sm:$0xff]
      %v544 = vld [vmem:[%s2 + $0x4d0] sm:$0xff]
      %v545 = vld [vmem:[%s2 + $0x4d8] sm:$0xff]
      %v546 = vld [vmem:[%s2 + $0x4e0] sm:$0xff]
      %v547 = vld [vmem:[%s2 + $0x4e8] sm:$0xff]
      %v548 = vld [vmem:[%s2 + $0x4f0] sm:$0xff]
      %v549 = vld [vmem:[%s2 + $0x4f8] sm:$0xff]
      %v550 = vld [vmem:[%s2 + $0x500] sm:$0xff]
      %v551 = vld [vmem:[%s2 + $0x508] sm:$0xff]
      %v552 = vld [vmem:[%s2 + $0x510] sm:$0xff]
      %v553 = vld [vmem:[%s2 + $0x518] sm:$0xff]
      %v554 = vld [vmem:[%s2 + $0x520] sm:$0xff]
      %v555 = vld [vmem:[%s2 + $0x528] sm:$0xff]
      %v556 = vld [vmem:[%s2 + $0x530] sm:$0xff]
      %v557 = vld [vmem:[%s2 + $0x538] sm:$0xff]
      %v558 = vld [vmem:[%s2 + $0x540] sm:$0xff]
      %v559 = vld [vmem:[%s2 + $0x548] sm:$0xff]
      %v560 = vld [vmem:[%s2 + $0x550] sm:$0xff]
      %v561 = vld [vmem:[%s2 + $0x558] sm:$0xff]
      %v562 = vld [vmem:[%s2 + $0x560] sm:$0xff]
      %v563 = vld [vmem:[%s2 + $0x568] sm:$0xff]
      %v564 = vld [vmem:[%s2 + $0x570] sm:$0xff]
      %v565 = vld [vmem:[%s2 + $0x578] sm:$0xff]
      %v566 = vld [vmem:[%s2 + $0x580] sm:$0xff]
      %v567 = vld [vmem:[%s2 + $0x588] sm:$0xff]
      %v568 = vld [vmem:[%s2 + $0x590] sm:$0xff]
      %v569 = vld [vmem:[%s2 + $0x598] sm:$0xff]
      %v570 = vld [vmem:[%s2 + $0x5a0] sm:$0xff]
      %v571 = vld [vmem:[%s2 + $0x5a8] sm:$0xff]
      %v572 = vld [vmem:[%s2 + $0x5b0] sm:$0xff]
      %v573 = vld [vmem:[%s2 + $0x5b8] sm:$0xff]
      %v574 = vld [vmem:[%s2 + $0x5c0] sm:$0xff]
      %v575 = vld [vmem:[%s2 + $0x5c8] sm:$0xff]
      %v576 = vld [vmem:[%s2 + $0x5d0] sm:$0xff]
      %v577 = vld [vmem:[%s2 + $0x5d8] sm:$0xff]
      %v578 = vld [vmem:[%s2 + $0x5e0] sm:$0xff]
      %v579 = vld [vmem:[%s2 + $0x5e8] sm:$0xff]
      %v580 = vld [vmem:[%s2 + $0x5f0] sm:$0xff]
      %v581 = vld [vmem:[%s2 + $0x5f8] sm:$0xff]
      %v582 = vld [vmem:[%s2 + $0x600] sm:$0xff]
      %v583 = vld [vmem:[%s2 + $0x608] sm:$0xff]
      %v584 = vld [vmem:[%s2 + $0x610] sm:$0xff]
      %v585 = vld [vmem:[%s2 + $0x618] sm:$0xff]
      %v586 = vld [vmem:[%s2 + $0x620] sm:$0xff]
      %v587 = vld [vmem:[%s2 + $0x628] sm:$0xff]
      %v588 = vld [vmem:[%s2 + $0x630] sm:$0xff]
      %v589 = vld [vmem:[%s2 + $0x638] sm:$0xff]
      %v590 = vld [vmem:[%s2 + $0x640] sm:$0xff]
      %v591 = vld [vmem:[%s2 + $0x648] sm:$0xff]
      %v592 = vld [vmem:[%s2 + $0x650] sm:$0xff]
      %v593 = vld [vmem:[%s2 + $0x658] sm:$0xff]
      %v594 = vld [vmem:[%s2 + $0x660] sm:$0xff]
      %v595 = vld [vmem:[%s2 + $0x668] sm:$0xff]
      %v596 = vld [vmem:[%s2 + $0x670] sm:$0xff]
      %v597 = vld [vmem:[%s2 + $0x678] sm:$0xff]
      %v598 = vld [vmem:[%s2 + $0x680] sm:$0xff]
      %v599 = vld [vmem:[%s2 + $0x688] sm:$0xff]
      %v600 = vld [vmem:[%s2 + $0x690] sm:$0xff]
      %v601 = vld [vmem:[%s2 + $0x698] sm:$0xff]
      %v602 = vld [vmem:[%s2 + $0x6a0] sm:$0xff]
      %v603 = vld [vmem:[%s2 + $0x6a8] sm:$0xff]
      %v604 = vld [vmem:[%s2 + $0x6b0] sm:$0xff]
      %v605 = vld [vmem:[%s2 + $0x6b8] sm:$0xff]
      %v606 = vld [vmem:[%s2 + $0x6c0] sm:$0xff]
      %v607 = vld [vmem:[%s2 + $0x6c8] sm:$0xff]
      %v608 = vld [vmem:[%s2 + $0x6d0] sm:$0xff]
      %v609 = vld [vmem:[%s2 + $0x6d8] sm:$0xff]
      %v610 = vld [vmem:[%s2 + $0x6e0] sm:$0xff]
      %v611 = vld [vmem:[%s2 + $0x6e8] sm:$0xff]
      %v612 = vld [vmem:[%s2 + $0x6f0] sm:$0xff]
      %v613 = vld [vmem:[%s2 + $0x6f8] sm:$0xff]
      %v614 = vld [vmem:[%s2 + $0x700] sm:$0xff]
      %v615 = vld [vmem:[%s2 + $0x708] sm:$0xff]
      %v616 = vld [vmem:[%s2 + $0x710] sm:$0xff]
      %v617 = vld [vmem:[%s2 + $0x718] sm:$0xff]
      %v618 = vld [vmem:[%s2 + $0x720] sm:$0xff]
      %v619 = vld [vmem:[%s2 + $0x728] sm:$0xff]
      %v620 = vld [vmem:[%s2 + $0x730] sm:$0xff]
      %v621 = vld [vmem:[%s2 + $0x738] sm:$0xff]
      %v622 = vld [vmem:[%s2 + $0x740] sm:$0xff]
      %v623 = vld [vmem:[%s2 + $0x748] sm:$0xff]
      %v624 = vld [vmem:[%s2 + $0x750] sm:$0xff]
      %v625 = vld [vmem:[%s2 + $0x758] sm:$0xff]
      %v626 = vld [vmem:[%s2 + $0x760] sm:$0xff]
      %v627 = vld [vmem:[%s2 + $0x768] sm:$0xff]
      %v628 = vld [vmem:[%s2 + $0x770] sm:$0xff]
      %v629 = vld [vmem:[%s2 + $0x778] sm:$0xff]
      %v630 = vld [vmem:[%s2 + $0x780] sm:$0xff]
      %v631 = vld [vmem:[%s2 + $0x788] sm:$0xff]
      %v632 = vld [vmem:[%s2 + $0x790] sm:$0xff]
      %v633 = vld [vmem:[%s2 + $0x798] sm:$0xff]
      %v634 = vld [vmem:[%s2 + $0x7a0] sm:$0xff]
      %v635 = vld [vmem:[%s2 + $0x7a8] sm:$0xff]
      %v636 = vld [vmem:[%s2 + $0x7b0] sm:$0xff]
      %v637 = vld [vmem:[%s2 + $0x7b8] sm:$0xff]
      %v638 = vld [vmem:[%s2 + $0x7c0] sm:$0xff]
      %v639 = vld [vmem:[%s2 + $0x7c8] sm:$0xff]
      %v640 = vld [vmem:[%s2 + $0x7d0] sm:$0xff]
      %v641 = vld [vmem:[%s2 + $0x7d8] sm:$0xff]
      %v642 = vld [vmem:[%s2 + $0x7e0] sm:$0xff]
      %v643 = vld [vmem:[%s2 + $0x7e8] sm:$0xff]
      %v644 = vld [vmem:[%s2 + $0x7f0] sm:$0xff]
      %v645 = vld [vmem:[%s2 + $0x7f8] sm:$0xff]
      %646 = vmatprep.subr.mxu0 %v511
      %647 = vmatpush1.msra.mxu0 %v510
      %648 = vmatprep.subr.mxu0 %v503
      %649 = vmatpush1.msra.mxu0 %v502
      %650 = vmatprep.subr.mxu0 %v495
      %651 = vmatpush1.msra.mxu0 %v494
      %652 = vmatprep.subr.mxu0 %v487
      %653 = vmatpush1.msra.mxu0 %v486
      %654 = vmatprep.subr.mxu0 %v479
      %655 = vmatpush1.msra.mxu0 %v478
      %656 = vmatprep.subr.mxu0 %v471
      %657 = vmatpush1.msra.mxu0 %v470
      %658 = vmatprep.subr.mxu0 %v463
      %659 = vmatpush1.msra.mxu0 %v462
      %660 = vmatprep.subr.mxu0 %v455
      %661 = vmatpush1.msra.mxu0 %v454
      %662 = vmatprep.subr.mxu0 %v447
      %663 = vmatpush1.msra.mxu0 %v446
      %664 = vmatprep.subr.mxu0 %v439
      %665 = vmatpush1.msra.mxu0 %v438
      %666 = vmatprep.subr.mxu0 %v431
      %667 = vmatpush1.msra.mxu0 %v430
      %668 = vmatprep.subr.mxu0 %v423
      %669 = vmatpush1.msra.mxu0 %v422
      %670 = vmatprep.subr.mxu0 %v415
      %671 = vmatpush1.msra.mxu0 %v414
      %672 = vmatprep.subr.mxu0 %v407
      %673 = vmatpush1.msra.mxu0 %v406
      %674 = vmatprep.subr.mxu0 %v399
      %675 = vmatpush1.msra.mxu0 %v398
      %676 = vmatprep.subr.mxu0 %v391
      %677 = vmatpush1.msra.mxu0 %v390
      %678 = vmatprep.subr.mxu0 %v639
      %679 = vmatpush2.msra.mxu0 %v638
      %680 = vmatprep.subr.mxu0 %v631
      %681 = vmatpush2.msra.mxu0 %v630
      %682 = vmatprep.subr.mxu0 %v623
      %683 = vmatpush2.msra.mxu0 %v622
      %684 = vmatprep.subr.mxu0 %v615
      %685 = vmatpush2.msra.mxu0 %v614
      %686 = vmatprep.subr.mxu0 %v607
      %687 = vmatpush2.msra.mxu0 %v606
      %688 = vmatprep.subr.mxu0 %v599
      %689 = vmatpush2.msra.mxu0 %v598
      %690 = vmatprep.subr.mxu0 %v591
      %691 = vmatpush2.msra.mxu0 %v590
      %692 = vmatprep.subr.mxu0 %v583
      %693 = vmatpush2.msra.mxu0 %v582
      %694 = vmatprep.subr.mxu0 %v575
      %695 = vmatpush2.msra.mxu0 %v574
      %696 = vmatprep.subr.mxu0 %v567
      %697 = vmatpush2.msra.mxu0 %v566
      %698 = vmatprep.subr.mxu0 %v559
      %699 = vmatpush2.msra.mxu0 %v558
      %700 = vmatprep.subr.mxu0 %v551
      %701 = vmatpush2.msra.mxu0 %v550
      %702 = vmatprep.subr.mxu0 %v543
      %703 = vmatpush2.msra.mxu0 %v542
      %704 = vmatprep.subr.mxu0 %v535
      %705 = vmatpush2.msra.mxu0 %v534
      %706 = vmatprep.subr.mxu0 %v527
      %707 = vmatpush2.msra.mxu0 %v526
      %708 = vmatprep.subr.mxu0 %v519
      %709 = vmatpush2.msra.mxu0 %v518
      %710 = vmatprep.mubr.f32.mxu0 %v388
      %711 = vmatmul.mubr.f32.gmra.mxu0 %v386
      %v712 = vpop.f32.mrf.mxu0
      %v713 = vadd.f32 0.0, %v712
      %v714 = vpop.f32.mrf.mxu0
      %v715 = vadd.f32 0.0, %v714
      %716 = vdwg.mxu0
      %717 = vmatprep.subr.mxu0 %v513
      %718 = vmatpush1.msra.mxu0 %v512
      %719 = vmatprep.subr.mxu0 %v505
      %720 = vmatpush1.msra.mxu0 %v504
      %721 = vmatprep.subr.mxu0 %v497
      %722 = vmatpush1.msra.mxu0 %v496
      %723 = vmatprep.subr.mxu0 %v489
      %724 = vmatpush1.msra.mxu0 %v488
      %725 = vmatprep.subr.mxu0 %v481
      %726 = vmatpush1.msra.mxu0 %v480
      %727 = vmatprep.subr.mxu0 %v473
      %728 = vmatpush1.msra.mxu0 %v472
      %729 = vmatprep.subr.mxu0 %v465
      %730 = vmatpush1.msra.mxu0 %v464
      %731 = vmatprep.subr.mxu0 %v457
      %732 = vmatpush1.msra.mxu0 %v456
      %733 = vmatprep.subr.mxu0 %v449
      %734 = vmatpush1.msra.mxu0 %v448
      %735 = vmatprep.subr.mxu0 %v441
      %736 = vmatpush1.msra.mxu0 %v440
      %737 = vmatprep.subr.mxu0 %v433
      %738 = vmatpush1.msra.mxu0 %v432
      %739 = vmatprep.subr.mxu0 %v425
      %740 = vmatpush1.msra.mxu0 %v424
      %741 = vmatprep.subr.mxu0 %v417
      %742 = vmatpush1.msra.mxu0 %v416
      %743 = vmatprep.subr.mxu0 %v409
      %744 = vmatpush1.msra.mxu0 %v408
      %745 = vmatprep.subr.mxu0 %v401
      %746 = vmatpush1.msra.mxu0 %v400
      %747 = vmatprep.subr.mxu0 %v393
      %748 = vmatpush1.msra.mxu0 %v392
      %749 = vmatprep.subr.mxu0 %v641
      %750 = vmatpush2.msra.mxu0 %v640
      %751 = vmatprep.subr.mxu0 %v633
      %752 = vmatpush2.msra.mxu0 %v632
      %753 = vmatprep.subr.mxu0 %v625
      %754 = vmatpush2.msra.mxu0 %v624
      %755 = vmatprep.subr.mxu0 %v617
      %756 = vmatpush2.msra.mxu0 %v616
      %757 = vmatprep.subr.mxu0 %v609
      %758 = vmatpush2.msra.mxu0 %v608
      %759 = vmatprep.subr.mxu0 %v601
      %760 = vmatpush2.msra.mxu0 %v600
      %761 = vmatprep.subr.mxu0 %v593
      %762 = vmatpush2.msra.mxu0 %v592
      %763 = vmatprep.subr.mxu0 %v585
      %764 = vmatpush2.msra.mxu0 %v584
      %765 = vmatprep.subr.mxu0 %v577
      %766 = vmatpush2.msra.mxu0 %v576
      %767 = vmatprep.subr.mxu0 %v569
      %768 = vmatpush2.msra.mxu0 %v568
      %769 = vmatprep.subr.mxu0 %v561
      %770 = vmatpush2.msra.mxu0 %v560
      %771 = vmatprep.subr.mxu0 %v553
      %772 = vmatpush2.msra.mxu0 %v552
      %773 = vmatprep.subr.mxu0 %v545
      %774 = vmatpush2.msra.mxu0 %v544
      %775 = vmatprep.subr.mxu0 %v537
      %776 = vmatpush2.msra.mxu0 %v536
      %777 = vmatprep.subr.mxu0 %v529
      %778 = vmatpush2.msra.mxu0 %v528
      %779 = vmatprep.subr.mxu0 %v521
      %780 = vmatpush2.msra.mxu0 %v520
      %781 = vmatprep.mubr.f32.mxu0 %v388
      %782 = vmatmul.mubr.f32.gmra.mxu0 %v386
      %v783 = vpop.f32.mrf.mxu0
      %v784 = vadd.f32 0.0, %v783
      %v785 = vpop.f32.mrf.mxu0
      %v786 = vadd.f32 0.0, %v785
      %787 = vdwg.mxu0
      %788 = vmatprep.subr.mxu0 %v515
      %789 = vmatpush1.msra.mxu0 %v514
      %790 = vmatprep.subr.mxu0 %v507
      %791 = vmatpush1.msra.mxu0 %v506
      %792 = vmatprep.subr.mxu0 %v499
      %793 = vmatpush1.msra.mxu0 %v498
      %794 = vmatprep.subr.mxu0 %v491
      %795 = vmatpush1.msra.mxu0 %v490
      %796 = vmatprep.subr.mxu0 %v483
      %797 = vmatpush1.msra.mxu0 %v482
      %798 = vmatprep.subr.mxu0 %v475
      %799 = vmatpush1.msra.mxu0 %v474
      %800 = vmatprep.subr.mxu0 %v467
      %801 = vmatpush1.msra.mxu0 %v466
      %802 = vmatprep.subr.mxu0 %v459
      %803 = vmatpush1.msra.mxu0 %v458
      %804 = vmatprep.subr.mxu0 %v451
      %805 = vmatpush1.msra.mxu0 %v450
      %806 = vmatprep.subr.mxu0 %v443
      %807 = vmatpush1.msra.mxu0 %v442
      %808 = vmatprep.subr.mxu0 %v435
      %809 = vmatpush1.msra.mxu0 %v434
      %810 = vmatprep.subr.mxu0 %v427
      %811 = vmatpush1.msra.mxu0 %v426
      %812 = vmatprep.subr.mxu0 %v419
      %813 = vmatpush1.msra.mxu0 %v418
      %814 = vmatprep.subr.mxu0 %v411
      %815 = vmatpush1.msra.mxu0 %v410
      %816 = vmatprep.subr.mxu0 %v403
      %817 = vmatpush1.msra.mxu0 %v402
      %818 = vmatprep.subr.mxu0 %v395
      %819 = vmatpush1.msra.mxu0 %v394
      %820 = vmatprep.subr.mxu0 %v643
      %821 = vmatpush2.msra.mxu0 %v642
      %822 = vmatprep.subr.mxu0 %v635
      %823 = vmatpush2.msra.mxu0 %v634
      %824 = vmatprep.subr.mxu0 %v627
      %825 = vmatpush2.msra.mxu0 %v626
      %826 = vmatprep.subr.mxu0 %v619
      %827 = vmatpush2.msra.mxu0 %v618
      %828 = vmatprep.subr.mxu0 %v611
      %829 = vmatpush2.msra.mxu0 %v610
      %830 = vmatprep.subr.mxu0 %v603
      %831 = vmatpush2.msra.mxu0 %v602
      %832 = vmatprep.subr.mxu0 %v595
      %833 = vmatpush2.msra.mxu0 %v594
      %834 = vmatprep.subr.mxu0 %v587
      %835 = vmatpush2.msra.mxu0 %v586
      %836 = vmatprep.subr.mxu0 %v579
      %837 = vmatpush2.msra.mxu0 %v578
      %838 = vmatprep.subr.mxu0 %v571
      %839 = vmatpush2.msra.mxu0 %v570
      %840 = vmatprep.subr.mxu0 %v563
      %841 = vmatpush2.msra.mxu0 %v562
      %842 = vmatprep.subr.mxu0 %v555
      %843 = vmatpush2.msra.mxu0 %v554
      %844 = vmatprep.subr.mxu0 %v547
      %845 = vmatpush2.msra.mxu0 %v546
      %846 = vmatprep.subr.mxu0 %v539
      %847 = vmatpush2.msra.mxu0 %v538
      %848 = vmatprep.subr.mxu0 %v531
      %849 = vmatpush2.msra.mxu0 %v530
      %850 = vmatprep.subr.mxu0 %v523
      %851 = vmatpush2.msra.mxu0 %v522
      %852 = vmatprep.mubr.f32.mxu0 %v388
      %853 = vmatmul.mubr.f32.gmra.mxu0 %v386
      %v854 = vpop.f32.mrf.mxu0
      %v855 = vadd.f32 0.0, %v854
      %v856 = vpop.f32.mrf.mxu0
      %v857 = vadd.f32 0.0, %v856
      %858 = vdwg.mxu0
      %859 = vmatprep.subr.mxu0 %v517
      %860 = vmatpush1.msra.mxu0 %v516
      %861 = vmatprep.subr.mxu0 %v509
      %862 = vmatpush1.msra.mxu0 %v508
      %863 = vmatprep.subr.mxu0 %v501
      %864 = vmatpush1.msra.mxu0 %v500
      %865 = vmatprep.subr.mxu0 %v493
      %866 = vmatpush1.msra.mxu0 %v492
      %867 = vmatprep.subr.mxu0 %v485
      %868 = vmatpush1.msra.mxu0 %v484
      %869 = vmatprep.subr.mxu0 %v477
      %870 = vmatpush1.msra.mxu0 %v476
      %871 = vmatprep.subr.mxu0 %v469
      %872 = vmatpush1.msra.mxu0 %v468
      %873 = vmatprep.subr.mxu0 %v461
      %874 = vmatpush1.msra.mxu0 %v460
      %875 = vmatprep.subr.mxu0 %v453
      %876 = vmatpush1.msra.mxu0 %v452
      %877 = vmatprep.subr.mxu0 %v445
      %878 = vmatpush1.msra.mxu0 %v444
      %879 = vmatprep.subr.mxu0 %v437
      %880 = vmatpush1.msra.mxu0 %v436
      %881 = vmatprep.subr.mxu0 %v429
      %882 = vmatpush1.msra.mxu0 %v428
      %883 = vmatprep.subr.mxu0 %v421
      %884 = vmatpush1.msra.mxu0 %v420
      %885 = vmatprep.subr.mxu0 %v413
      %886 = vmatpush1.msra.mxu0 %v412
      %887 = vmatprep.subr.mxu0 %v405
      %888 = vmatpush1.msra.mxu0 %v404
      %889 = vmatprep.subr.mxu0 %v397
      %890 = vmatpush1.msra.mxu0 %v396
      %891 = vmatprep.subr.mxu0 %v645
      %892 = vmatpush2.msra.mxu0 %v644
      %893 = vmatprep.subr.mxu0 %v637
      %894 = vmatpush2.msra.mxu0 %v636
      %895 = vmatprep.subr.mxu0 %v629
      %896 = vmatpush2.msra.mxu0 %v628
      %897 = vmatprep.subr.mxu0 %v621
      %898 = vmatpush2.msra.mxu0 %v620
      %899 = vmatprep.subr.mxu0 %v613
      %900 = vmatpush2.msra.mxu0 %v612
      %901 = vmatprep.subr.mxu0 %v605
      %902 = vmatpush2.msra.mxu0 %v604
      %903 = vmatprep.subr.mxu0 %v597
      %904 = vmatpush2.msra.mxu0 %v596
      %905 = vmatprep.subr.mxu0 %v589
      %906 = vmatpush2.msra.mxu0 %v588
      %907 = vmatprep.subr.mxu0 %v581
      %908 = vmatpush2.msra.mxu0 %v580
      %909 = vmatprep.subr.mxu0 %v573
      %910 = vmatpush2.msra.mxu0 %v572
      %911 = vmatprep.subr.mxu0 %v565
      %912 = vmatpush2.msra.mxu0 %v564
      %913 = vmatprep.subr.mxu0 %v557
      %914 = vmatpush2.msra.mxu0 %v556
      %915 = vmatprep.subr.mxu0 %v549
      %916 = vmatpush2.msra.mxu0 %v548
      %917 = vmatprep.subr.mxu0 %v541
      %918 = vmatpush2.msra.mxu0 %v540
      %919 = vmatprep.subr.mxu0 %v533
      %920 = vmatpush2.msra.mxu0 %v532
      %921 = vmatprep.subr.mxu0 %v525
      %922 = vmatpush2.msra.mxu0 %v524
      %923 = vmatprep.mubr.f32.mxu0 %v388
      %924 = vmatmul.mubr.f32.gmra.mxu0 %v386
      %v925 = vpop.f32.mrf.mxu0
      %v926 = vadd.f32 0.0, %v925
      %v927 = vpop.f32.mrf.mxu0
      %v928 = vadd.f32 0.0, %v927
      %929 = vdwg.mxu0
      %v938 = vcombine.low %v713, %v715
      %v939 = vcombine.low %v784, %v786
      %v940 = vcombine.low %v855, %v857
      %v941 = vcombine.low %v926, %v928
      %946 = vst [vmem:[%s298] sm:$0x33] %v938
      %947 = vst [vmem:[%s298 + $0x8] sm:$0x33] %v939
      %948 = vst [vmem:[%s298 + $0x10] sm:$0x33] %v940
      %949 = vst [vmem:[%s298 + $0x18] sm:$0x33] %v941
      %v950 = vld [vmem:[%s288] sm:$0xff]
      %v951 = vld [vmem:[%s288 + $0x8] sm:$0xff]
      %v954 = vcombine.low %v950, %v950
      %v956 = vunpack.c.l.s4 1983009808
      %v957 = vunpack.c.0.s8 %v956
      %v958 = vlaneseq
      %v959 = vshrl.u32 %v958, 7
      %v960 = vsub.s32 %v957, %v959
      %v961 = vrot.slane %v954, %v960
      %v963 = vunpack.c.l.s4 1983009808
      %v964 = vunpack.c.0.s8 %v963
      %v965 = vlaneseq
      %v966 = vshrl.u32 %v965, 7
      %v967 = vsub.s32 %v964, %v966
      %v968 = vrot.slane %v950, %v967
      %v969 = vcombine.low %v951, %v951
      %v971 = vunpack.c.l.s4 1983009808
      %v972 = vunpack.c.0.s8 %v971
      %v973 = vlaneseq
      %v974 = vshrl.u32 %v973, 7
      %v975 = vsub.s32 %v972, %v974
      %v976 = vrot.slane %v969, %v975
      %v978 = vunpack.c.l.s4 1983009808
      %v979 = vunpack.c.0.s8 %v978
      %v980 = vlaneseq
      %v981 = vshrl.u32 %v980, 7
      %v982 = vsub.s32 %v979, %v981
      %v983 = vrot.slane %v951, %v982
      %988 = vst [vmem:[%s298] sm:$0xcc] %v961
      %989 = vst [vmem:[%s298 + $0x8] sm:$0xcc] %v968
      %990 = vst [vmem:[%s298 + $0x10] sm:$0xcc] %v976
      %991 = vst [vmem:[%s298 + $0x18] sm:$0xcc] %v983
      %s992 = smul.u32 8, %s21
      %p993 = scmp.lt.s32.totalorder %s20, 1
      %s994 = scalar_select %p993, %s20, 1
      %p995 = scmp.lt.s32.totalorder %s992, 7
      %s996 = scalar_select %p995, %s992, 7
      %s997 = smul.addr %s994, 8
      %s998 = sadd.s32 %s996, %s997
      %s999 = smul.addr %s998, 4
      %s1000 = scalar_lea.vmem %s5, %s999
      // Predicated region
      $region41: #{upsample_forward.1} parent=39 // pred_check
        %p1001 = pneg %p167
      $region42: #{upsample_forward.1} parent=39 // pred_check_branch
        %1003 = sbr.rel (%p1001) target = $region44
      $region43: #{upsample_forward.1} parent=39 // pred_region
        %s1004 = smul.u32 8, %s21
      $region44: #{upsample_forward.1} parent=39 // pred_fallthru
        _
    $region40: #{upsample_forward.1} parent=5 // pred_fallthru
      _
    %p1005 = scmp.le.s32.totalorder 2, %s11
    // Predicated region
    $region45: #{upsample_forward.1} parent=5 // pred_check
      %p1006 = pneg %p1005
    $region46: #{upsample_forward.1} parent=5 // pred_check_branch
      %1008 = sbr.rel (%p1006) target = $region48
    $region47: #{upsample_forward.1} parent=5 // pred_region
      %s1009 = ssub.s32 %s11, 2
      // Predicated region
      $region49: #{upsample_forward.1} parent=47 // pred_check
        %p1010 = pneg %p173
      $region50: #{upsample_forward.1} parent=47 // pred_check_branch
        %1012 = sbr.rel (%p1010) target = $region52
      $region51: #{upsample_forward.1} parent=47 // pred_region
        %s1013 = smul.u32 8, %s23
        %p1014 = scmp.lt.s32.totalorder %s22, 1
        %s1015 = scalar_select %p1014, %s22, 1
        %p1016 = scmp.lt.s32.totalorder %s1013, 7
        %s1017 = scalar_select %p1016, %s1013, 7
        %s1018 = smul.addr %s1015, 8
        %s1019 = sadd.s32 %s1017, %s1018
        %s1020 = smul.addr %s1019, 4
        %s1021 = scalar_lea.vmem %s5, %s1020
      $region52: #{upsample_forward.1} parent=47 // pred_fallthru
        _
    $region48: #{upsample_forward.1} parent=5 // pred_fallthru
      _
  $region6: #{upsample_forward.1} parent=0 // loop_footer
    %s15 = sadd.s32 1, %s11
  $region7: #{upsample_forward.1} parent=0 // loop_footer_branch
    %10 = sbr.rel target = $region3
  $region8: #{upsample_forward.1} parent=0 // loop_exit
    _

</llo_original>
